<compile_context>
chip_gen: v6e
topology: v6e:2x2x1
jax: 0.10.0
libtpu: 0.0.40
codegen_flags: <defaults>
</compile_context>

<pallas_src>
import jax
import jax.numpy as jnp
from jax.experimental import pallas as pl
from jax.experimental.pallas import tpu as pltpu


def _round_up(x, m):
    return ((x + m - 1) // m) * m


def classifier_kernel(x_ref, w1_ref, b1_ref, w2_ref, b2_ref, out_ref):
    # x_ref:  (tb, 2*d_mlp)   w1_ref: (2*d_mlp, d_mlp)   b1_ref: (1, d_mlp) f32
    # w2_ref: (d_mlp, C)      b2_ref: (1, C) f32          out_ref: (tb, C)
    # TODO(synk): dropout with p>0 (training mode) not implemented; inference
    # (p=0.0) path is exact.
    h = jnp.dot(x_ref[...], w1_ref[...], preferred_element_type=jnp.float32)
    # Bias + tanh in f32: exact on all chips (v5e EUP has no bf16 path).
    h = jnp.tanh(h + b1_ref[...])
    logits = jnp.dot(h.astype(w2_ref.dtype), w2_ref[...],
                     preferred_element_type=jnp.float32)
    out_ref[...] = (logits + b2_ref[...]).astype(out_ref.dtype)


def classifier_forward(x, w1, b1, w2, b2, *, block_b=1024, compute_dtype=None):
    """Forward pass. Weights pre-transposed: w1 (2*d_mlp, d_mlp), w2 (d_mlp, C)."""
    B, d_in = x.shape
    d_mlp = w1.shape[1]
    num_classes = w2.shape[1]
    out_dtype = x.dtype

    if compute_dtype is None:
        compute_dtype = x.dtype

    # --- Tile selection -------------------------------------------------
    # Biggest tile up to block_b, but (a) a multiple of 8 sublanes and
    # (b) small enough that the grid has >= 2 steps when B allows it, so the
    # "parallel" batch axis can shard across v7x's two TensorCores.
    tb = min(block_b, max(8, _round_up(pl.cdiv(B, 2), 8)))
    tb = _round_up(tb, 8)
    b_pad = _round_up(B, tb)
    grid = (b_pad // tb,)

    # --- Prepare operands (cast + pad in the wrapper) ---------------------
    x_c = x.astype(compute_dtype)
    if b_pad != B:
        x_c = jnp.pad(x_c, ((0, b_pad - B), (0, 0)))
    w1_c = w1.astype(compute_dtype)
    w2_c = w2.astype(compute_dtype)
    b1_c = b1.astype(jnp.float32).reshape(1, d_mlp)
    b2_c = b2.astype(jnp.float32).reshape(1, num_classes)

    # --- Cost estimate (advisory, helps XLA schedule around the call) -----
    in_bytes = jnp.dtype(compute_dtype).itemsize
    out_bytes = jnp.dtype(out_dtype).itemsize
    cost = pl.CostEstimate(
        flops=2 * b_pad * (d_in * d_mlp + d_mlp * num_classes),
        transcendentals=b_pad * d_mlp,
        bytes_accessed=(b_pad * d_in * in_bytes
                        + b_pad * num_classes * out_bytes
                        + (d_in * d_mlp + d_mlp * num_classes) * in_bytes
                        + (d_mlp + num_classes) * 4),
    )

    # --- VMEM budget check (double-buffered x/out tiles + resident weights).
    # Default scoped VMEM: 16 MiB (v5e) / 32 MiB (v6e, v7x). Only raise the
    # limit if the chosen tile actually needs it; cap at v7x physical 64 MiB.
    vmem_est = (2 * tb * d_in * in_bytes
                + 2 * tb * num_classes * out_bytes
                + 2 * (d_in * d_mlp + d_mlp * num_classes) * in_bytes
                + 2 * (d_mlp + num_classes) * 4)
    cp_kwargs = dict(dimension_semantics=("parallel",))
    if vmem_est > (16 << 20):
        cp_kwargs["vmem_limit_bytes"] = min(int(vmem_est * 2), 64 << 20)

    out = pl.pallas_call(
        classifier_kernel,
        out_shape=jax.ShapeDtypeStruct((b_pad, num_classes), out_dtype),
        grid_spec=pltpu.PrefetchScalarGridSpec(
            num_scalar_prefetch=0,
            grid=grid,
            in_specs=[
                pl.BlockSpec((tb, d_in), lambda i: (i, 0)),           # x tile
                pl.BlockSpec((d_in, d_mlp), lambda i: (0, 0)),        # W1 (resident)
                pl.BlockSpec((1, d_mlp), lambda i: (0, 0)),           # b1
                pl.BlockSpec((d_mlp, num_classes), lambda i: (0, 0)), # W2 (resident)
                pl.BlockSpec((1, num_classes), lambda i: (0, 0)),     # b2
            ],
            out_specs=pl.BlockSpec((tb, num_classes), lambda i: (i, 0)),
        ),
        compiler_params=pltpu.CompilerParams(**cp_kwargs),
        cost_estimate=cost,
    )(x_c, w1_c, b1_c, w2_c, b2_c)

    return out[:B]


if __name__ == "__main__":
    # Small shapes consistent with the module: d_mlp=32, num_classes=8.
    d_mlp = 32
    num_classes = 8

    key = jax.random.PRNGKey(0)
    k_x, k_w1, k_b1, k_w2, k_b2, k_x2 = jax.random.split(key, 6)

    # Deterministic parameter init (uniform, like torch Linear default range).
    lim1 = 1.0 / jnp.sqrt(2 * d_mlp)
    lim2 = 1.0 / jnp.sqrt(d_mlp)
    w1 = jax.random.uniform(k_w1, (2 * d_mlp, d_mlp), jnp.float32, -lim1, lim1)
    b1 = jax.random.uniform(k_b1, (1, d_mlp), jnp.float32, -lim1, lim1)
    w2 = jax.random.uniform(k_w2, (d_mlp, num_classes), jnp.float32, -lim2, lim2)
    b2 = jax.random.uniform(k_b2, (1, num_classes), jnp.float32, -lim2, lim2)

    # --- Case 1: f32 path, batch=8 (exact vs reference) -------------------
    x = jax.random.normal(k_x, (8, 2 * d_mlp), dtype=jnp.float32)
    logits = classifier_forward(x, w1, b1, w2, b2)
    logits = jax.block_until_ready(logits)
    ref = jnp.tanh(x @ w1 + b1) @ w2 + b2
    assert logits.shape == (8, num_classes)
    assert jnp.allclose(logits, ref, atol=1e-5, rtol=1e-5), "f32 mismatch vs reference"

    # --- Case 2: bf16 compute, ragged batch=20 (pads to 32, grid of 2) ----
    x2 = jax.random.normal(k_x2, (20, 2 * d_mlp), dtype=jnp.float32)
    logits2 = classifier_forward(x2, w1, b1, w2, b2, compute_dtype=jnp.bfloat16)
    logits2 = jax.block_until_ready(logits2)
    ref2 = jnp.tanh(x2 @ w1 + b1) @ w2 + b2
    assert logits2.shape == (20, num_classes)
    assert jnp.allclose(logits2, ref2, atol=3e-2, rtol=3e-2), "bf16 mismatch vs reference"

    print("KERNEL_OK")
</pallas_src>

<mosaic_0001>
module attributes {stable_mosaic.version = 11 : i64} {
  func.func @classifier_kernel(%arg0: i32, %arg1: memref<8x64xf32, #tpu.memory_space<vmem>>, %arg2: memref<64x32xf32, #tpu.memory_space<vmem>>, %arg3: memref<1x32xf32, #tpu.memory_space<vmem>>, %arg4: memref<32x8xf32, #tpu.memory_space<vmem>>, %arg5: memref<1x8xf32, #tpu.memory_space<vmem>>, %arg6: memref<8x8xf32, #tpu.memory_space<vmem>>) attributes {dimension_semantics = [#tpu.dimension_semantics<parallel>], iteration_bounds = array<i64: 1>, scalar_prefetch = 0 : i64, scratch_operands = 0 : i64, tpu.core_type = #tpu.core_type<tc>, window_params = [{transform_indices = @transform_0, window_bounds = array<i64: 8, 64>}, {pipeline_mode = #tpu.pipeline_mode<synchronous>, transform_indices = @transform_1, window_bounds = array<i64: 64, 32>}, {pipeline_mode = #tpu.pipeline_mode<synchronous>, transform_indices = @transform_2, window_bounds = array<i64: 1, 32>}, {pipeline_mode = #tpu.pipeline_mode<synchronous>, transform_indices = @transform_3, window_bounds = array<i64: 32, 8>}, {pipeline_mode = #tpu.pipeline_mode<synchronous>, transform_indices = @transform_4, window_bounds = array<i64: 1, 8>}, {transform_indices = @transform_5, window_bounds = array<i64: 8, 8>}]} {
    %c0 = arith.constant 0 : index
    %c0_0 = arith.constant 0 : index
    %0 = vector.load %arg1[%c0, %c0_0] : memref<8x64xf32, #tpu.memory_space<vmem>>, vector<8x64xf32>
    %c0_1 = arith.constant 0 : index
    %c0_2 = arith.constant 0 : index
    %1 = vector.load %arg2[%c0_1, %c0_2] : memref<64x32xf32, #tpu.memory_space<vmem>>, vector<64x32xf32>
    %cst = arith.constant dense<0.000000e+00> : vector<8x32xf32>
    %2 = tpu.matmul %0, %1, %cst {dimension_numbers = #tpu.dot_dimension_numbers<[1], [0], [0], [1], [0, 0, 1, 1], [], []>} : vector<8x64xf32>, vector<64x32xf32>, vector<8x32xf32> -> vector<8x32xf32>
    %c0_3 = arith.constant 0 : index
    %c0_4 = arith.constant 0 : index
    %3 = vector.load %arg3[%c0_3, %c0_4] : memref<1x32xf32, #tpu.memory_space<vmem>>, vector<1x32xf32>
    %4 = vector.broadcast %3 : vector<1x32xf32> to vector<8x32xf32>
    %5 = arith.addf %2, %4 : vector<8x32xf32>
    %6 = math.tanh %5 : vector<8x32xf32>
    %c0_5 = arith.constant 0 : index
    %c0_6 = arith.constant 0 : index
    %7 = vector.load %arg4[%c0_5, %c0_6] : memref<32x8xf32, #tpu.memory_space<vmem>>, vector<32x8xf32>
    %cst_7 = arith.constant dense<0.000000e+00> : vector<8x8xf32>
    %8 = tpu.matmul %6, %7, %cst_7 {dimension_numbers = #tpu.dot_dimension_numbers<[1], [0], [0], [1], [0, 0, 1, 1], [], []>} : vector<8x32xf32>, vector<32x8xf32>, vector<8x8xf32> -> vector<8x8xf32>
    %c0_8 = arith.constant 0 : index
    %c0_9 = arith.constant 0 : index
    %9 = vector.load %arg5[%c0_8, %c0_9] : memref<1x8xf32, #tpu.memory_space<vmem>>, vector<1x8xf32>
    %10 = vector.broadcast %9 : vector<1x8xf32> to vector<8x8xf32>
    %11 = arith.addf %8, %10 : vector<8x8xf32>
    %c0_10 = arith.constant 0 : index
    %c0_11 = arith.constant 0 : index
    %12 = vector.load %arg6[%c0_10, %c0_11] : memref<8x8xf32, #tpu.memory_space<vmem>>, vector<8x8xf32>
    tpu.vector_store %arg6[%c0_10, %c0_11], %11 {strides = array<i32>} : memref<8x8xf32, #tpu.memory_space<vmem>>, vector<8x8xf32>,
    return
  }
  func.func @transform_0(%arg0: i32) -> (i32, i32) {
    %c0_i32 = arith.constant 0 : i32
    %c0_i32_0 = arith.constant 0 : i32
    return %arg0, %c0_i32 : i32, i32
  }
  func.func @transform_1(%arg0: i32) -> (i32, i32) {
    %c0_i32 = arith.constant 0 : i32
    %c0_i32_0 = arith.constant 0 : i32
    %c0_i32_1 = arith.constant 0 : i32
    return %c0_i32, %c0_i32_0 : i32, i32
  }
  func.func @transform_2(%arg0: i32) -> (i32, i32) {
    %c0_i32 = arith.constant 0 : i32
    %c0_i32_0 = arith.constant 0 : i32
    %c0_i32_1 = arith.constant 0 : i32
    return %c0_i32, %c0_i32_0 : i32, i32
  }
  func.func @transform_3(%arg0: i32) -> (i32, i32) {
    %c0_i32 = arith.constant 0 : i32
    %c0_i32_0 = arith.constant 0 : i32
    %c0_i32_1 = arith.constant 0 : i32
    return %c0_i32, %c0_i32_0 : i32, i32
  }
  func.func @transform_4(%arg0: i32) -> (i32, i32) {
    %c0_i32 = arith.constant 0 : i32
    %c0_i32_0 = arith.constant 0 : i32
    %c0_i32_1 = arith.constant 0 : i32
    return %c0_i32, %c0_i32_0 : i32, i32
  }
  func.func @transform_5(%arg0: i32) -> (i32, i32) {
    %c0_i32 = arith.constant 0 : i32
    %c0_i32_0 = arith.constant 0 : i32
    return %arg0, %c0_i32 : i32, i32
  }
}

</mosaic_0001>

<llo_original>
// kernel: tpu_custom_call.1
$region0: #{tpu_custom_call.1}
  #allocation0 [shape = 'u32[]', space=smem, size = 0x4, offset = 0x4, fixed_abs, tag = 'smem constant byte address 0x4 - core index']
  #allocation1 [shape = 'u32[144,128]{1,0:T(1,128)}', space=vmem, size = 0x12000, scoped, tag = 'internal scratch']
  %s0 = inlined_call_operand.vmem [shape: f32[8,64], index: 0, kind: input, shape index: {}]
  %s1 = inlined_call_operand.vmem [shape: f32[64,32], index: 1, kind: input, shape index: {}]
  %s2 = inlined_call_operand.vmem [shape: f32[1,32], index: 2, kind: input, shape index: {}]
  %s3 = inlined_call_operand.vmem [shape: f32[32,8], index: 3, kind: input, shape index: {}]
  %s4 = inlined_call_operand.vmem [shape: f32[1,8], index: 4, kind: input, shape index: {}]
  %s5 = inlined_call_operand.hbm [shape: f32[8,8], index: 5, kind: output, shape index: {}]
  %s6 = sld [smem:[#allocation0]]
  $region30: #{tpu_custom_call.1} parent=0
    _
  %s8 = ssub.s32 1, %s6
  %s9 = scalar_select 0, %s8, %s6
  $region1: #{tpu_custom_call.1} parent=0
    #allocation2 [shape = 'u8[4096]{0}', space=vmem, size = 0x1000, scoped, tag = 'output window, operand 0, single buffered']
    #allocation3 [shape = 's32[1]{0}', space=sflag, size = 0x4, scoped, tag = 'scoped memory for tpu_custom_call.1']
    %10 = vsyncpa [#allocation3], 0
    // Predicated region
    $region2: #{tpu_custom_call.1} parent=1 // pred_check
      _
    $region3: #{tpu_custom_call.1} parent=1 // pred_check_branch
      %12 = sbr.rel (0) target = $region5
    $region4: #{tpu_custom_call.1} parent=1 // pred_region
      _
    $region5: #{tpu_custom_call.1} parent=1 // pred_fallthru
      _
    // Predicated region
    $region6: #{tpu_custom_call.1} parent=1 // pred_check
      _
    $region7: #{tpu_custom_call.1} parent=1 // pred_check_branch
      %14 = sbr.rel (0) target = $region9
    $region8: #{tpu_custom_call.1} parent=1 // pred_region
      _
    $region9: #{tpu_custom_call.1} parent=1 // pred_fallthru
      _
    // Predicated region
    $region10: #{tpu_custom_call.1} parent=1 // pred_check
      _
    $region11: #{tpu_custom_call.1} parent=1 // pred_check_branch
      %16 = sbr.rel (0) target = $region13
    $region12: #{tpu_custom_call.1} parent=1 // pred_region
      _
    $region13: #{tpu_custom_call.1} parent=1 // pred_fallthru
      _
    // Predicated region
    $region14: #{tpu_custom_call.1} parent=1 // pred_check
      _
    $region15: #{tpu_custom_call.1} parent=1 // pred_check_branch
      %18 = sbr.rel (0) target = $region17
    $region16: #{tpu_custom_call.1} parent=1 // pred_region
      _
    $region17: #{tpu_custom_call.1} parent=1 // pred_fallthru
      _
    // Predicated region
    $region18: #{tpu_custom_call.1} parent=1 // pred_check
      _
    $region19: #{tpu_custom_call.1} parent=1 // pred_check_branch
      %20 = sbr.rel (0) target = $region21
    $region20: #{tpu_custom_call.1} parent=1 // pred_region
      _
    $region21: #{tpu_custom_call.1} parent=1 // pred_fallthru
      _
    %v21 = vld [vmem:[%s0] sm:$0xff]
    %v22 = vld [vmem:[%s1] sm:$0xff]
    %v23 = vld [vmem:[%s1 + $0x8] sm:$0xff]
    %v24 = vld [vmem:[%s1 + $0x10] sm:$0xff]
    %v25 = vld [vmem:[%s1 + $0x18] sm:$0xff]
    %v26 = vld [vmem:[%s1 + $0x20] sm:$0xff]
    %v27 = vld [vmem:[%s1 + $0x28] sm:$0xff]
    %v28 = vld [vmem:[%s1 + $0x30] sm:$0xff]
    %v29 = vld [vmem:[%s1 + $0x38] sm:$0xff]
    %v30 = vld [vmem:[%s2] sm:$0x1]
    %v32 = vlaneseq
    %v33 = vshrl.u32 %v32, 7
    %v34 = vsub.s32 0, %v33
    %v35 = vrot.slane %v30, %v34
    %vm37 = vcmask 523264
    %v39 = vsel %vm37, %v21, 0
    %41 = vmatprep.subr.mxu0 0.0
    %42 = vmatpush1.msra.mxu0 0.0
    %43 = vmatprep.subr.mxu0 0.0
    %44 = vmatpush1.msra.mxu0 0.0
    %45 = vmatprep.subr.mxu0 0.0
    %46 = vmatpush1.msra.mxu0 0.0
    %47 = vmatprep.subr.mxu0 0.0
    %48 = vmatpush1.msra.mxu0 0.0
    %49 = vmatprep.subr.mxu0 0.0
    %50 = vmatpush1.msra.mxu0 0.0
    %51 = vmatprep.subr.mxu0 0.0
    %52 = vmatpush1.msra.mxu0 0.0
    %53 = vmatprep.subr.mxu0 0.0
    %54 = vmatpush1.msra.mxu0 0.0
    %55 = vmatprep.subr.mxu0 0.0
    %56 = vmatpush1.msra.mxu0 0.0
    %57 = vmatprep.subr.mxu0 0.0
    %58 = vmatpush1.msra.mxu0 %v29
    %59 = vmatprep.subr.mxu0 0.0
    %60 = vmatpush1.msra.mxu0 %v28
    %61 = vmatprep.subr.mxu0 0.0
    %62 = vmatpush1.msra.mxu0 %v27
    %63 = vmatprep.subr.mxu0 0.0
    %64 = vmatpush1.msra.mxu0 %v26
    %65 = vmatprep.subr.mxu0 0.0
    %66 = vmatpush1.msra.mxu0 %v25
    %67 = vmatprep.subr.mxu0 0.0
    %68 = vmatpush1.msra.mxu0 %v24
    %69 = vmatprep.subr.mxu0 0.0
    %70 = vmatpush1.msra.mxu0 %v23
    %71 = vmatprep.subr.mxu0 0.0
    %72 = vmatpush1.msra.mxu0 %v22
    %73 = vmatprep.subr.mxu0 0.0
    %74 = vmatpush2.msra.mxu0 0.0
    %75 = vmatprep.subr.mxu0 0.0
    %76 = vmatpush2.msra.mxu0 0.0
    %77 = vmatprep.subr.mxu0 0.0
    %78 = vmatpush2.msra.mxu0 0.0
    %79 = vmatprep.subr.mxu0 0.0
    %80 = vmatpush2.msra.mxu0 0.0
    %81 = vmatprep.subr.mxu0 0.0
    %82 = vmatpush2.msra.mxu0 0.0
    %83 = vmatprep.subr.mxu0 0.0
    %84 = vmatpush2.msra.mxu0 0.0
    %85 = vmatprep.subr.mxu0 0.0
    %86 = vmatpush2.msra.mxu0 0.0
    %87 = vmatprep.subr.mxu0 0.0
    %88 = vmatpush2.msra.mxu0 0.0
    %89 = vmatprep.subr.mxu0 0.0
    %90 = vmatpush2.msra.mxu0 0.0
    %91 = vmatprep.subr.mxu0 0.0
    %92 = vmatpush2.msra.mxu0 0.0
    %93 = vmatprep.subr.mxu0 0.0
    %94 = vmatpush2.msra.mxu0 0.0
    %95 = vmatprep.subr.mxu0 0.0
    %96 = vmatpush2.msra.mxu0 0.0
    %97 = vmatprep.subr.mxu0 0.0
    %98 = vmatpush2.msra.mxu0 0.0
    %99 = vmatprep.subr.mxu0 0.0
    %100 = vmatpush2.msra.mxu0 0.0
    %101 = vmatprep.subr.mxu0 0.0
    %102 = vmatpush2.msra.mxu0 0.0
    %103 = vmatprep.subr.mxu0 0.0
    %104 = vmatpush2.msra.mxu0 0.0
    %105 = vmatprep.mubr.f32.mxu0 0.0
    %106 = vmatmul.mubr.f32.gmra.mxu0 %v39
    %v107 = vpop.f32.mrf.mxu0
    %v108 = vadd.f32 %v35, %v107
    %v109 = vpop.f32.mrf.mxu0
    %110 = vdwg.mxu0
    %v111 = vtanh.pop %v108
    %v112 = vld [vmem:[%s3] sm:$0xff]
    %v113 = vld [vmem:[%s3 + $0x8] sm:$0xff]
    %v114 = vld [vmem:[%s3 + $0x10] sm:$0xff]
    %v115 = vld [vmem:[%s3 + $0x18] sm:$0xff]
    %v116 = vld [vmem:[%s4] sm:$0x1]
    %v118 = vlaneseq
    %v119 = vshrl.u32 %v118, 7
    %v120 = vsub.s32 0, %v119
    %v121 = vrot.slane %v116, %v120
    %vm123 = vcmask 261120
    %v125 = vsel %vm123, %v111, 0
    %127 = vmatprep.subr.mxu0 0.0
    %128 = vmatpush1.msra.mxu0 0.0
    %129 = vmatprep.subr.mxu0 0.0
    %130 = vmatpush1.msra.mxu0 0.0
    %131 = vmatprep.subr.mxu0 0.0
    %132 = vmatpush1.msra.mxu0 0.0
    %133 = vmatprep.subr.mxu0 0.0
    %134 = vmatpush1.msra.mxu0 0.0
    %135 = vmatprep.subr.mxu0 0.0
    %136 = vmatpush1.msra.mxu0 0.0
    %137 = vmatprep.subr.mxu0 0.0
    %138 = vmatpush1.msra.mxu0 0.0
    %139 = vmatprep.subr.mxu0 0.0
    %140 = vmatpush1.msra.mxu0 0.0
    %141 = vmatprep.subr.mxu0 0.0
    %142 = vmatpush1.msra.mxu0 0.0
    %143 = vmatprep.subr.mxu0 0.0
    %144 = vmatpush1.msra.mxu0 0.0
    %145 = vmatprep.subr.mxu0 0.0
    %146 = vmatpush1.msra.mxu0 0.0
    %147 = vmatprep.subr.mxu0 0.0
    %148 = vmatpush1.msra.mxu0 0.0
    %149 = vmatprep.subr.mxu0 0.0
    %150 = vmatpush1.msra.mxu0 0.0
    %151 = vmatprep.subr.mxu0 0.0
    %152 = vmatpush1.msra.mxu0 %v115
    %153 = vmatprep.subr.mxu0 0.0
    %154 = vmatpush1.msra.mxu0 %v114
    %155 = vmatprep.subr.mxu0 0.0
    %156 = vmatpush1.msra.mxu0 %v113
    %157 = vmatprep.subr.mxu0 0.0
    %158 = vmatpush1.msra.mxu0 %v112
    %159 = vmatprep.subr.mxu0 0.0
    %160 = vmatpush2.msra.mxu0 0.0
    %161 = vmatprep.subr.mxu0 0.0
    %162 = vmatpush2.msra.mxu0 0.0
    %163 = vmatprep.subr.mxu0 0.0
    %164 = vmatpush2.msra.mxu0 0.0
    %165 = vmatprep.subr.mxu0 0.0
    %166 = vmatpush2.msra.mxu0 0.0
    %167 = vmatprep.subr.mxu0 0.0
    %168 = vmatpush2.msra.mxu0 0.0
    %169 = vmatprep.subr.mxu0 0.0
    %170 = vmatpush2.msra.mxu0 0.0
    %171 = vmatprep.subr.mxu0 0.0
    %172 = vmatpush2.msra.mxu0 0.0
    %173 = vmatprep.subr.mxu0 0.0
    %174 = vmatpush2.msra.mxu0 0.0
    %175 = vmatprep.subr.mxu0 0.0
    %176 = vmatpush2.msra.mxu0 0.0
    %177 = vmatprep.subr.mxu0 0.0
    %178 = vmatpush2.msra.mxu0 0.0
    %179 = vmatprep.subr.mxu0 0.0
    %180 = vmatpush2.msra.mxu0 0.0
    %181 = vmatprep.subr.mxu0 0.0
    %182 = vmatpush2.msra.mxu0 0.0
    %183 = vmatprep.subr.mxu0 0.0
    %184 = vmatpush2.msra.mxu0 0.0
    %185 = vmatprep.subr.mxu0 0.0
    %186 = vmatpush2.msra.mxu0 0.0
    %187 = vmatprep.subr.mxu0 0.0
    %188 = vmatpush2.msra.mxu0 0.0
    %189 = vmatprep.subr.mxu0 0.0
    %190 = vmatpush2.msra.mxu0 0.0
    %191 = vmatprep.mubr.f32.mxu0 0.0
    %192 = vmatmul.mubr.f32.gmra.mxu0 %v125
    %v193 = vpop.f32.mrf.mxu0
    %v194 = vadd.f32 %v121, %v193
    %v195 = vpop.f32.mrf.mxu0
    %196 = vdwg.mxu0
    %vm197 = vcmask 64512
    %198 = vst.msk [vmem:[#allocation2] sm:$0xff] %vm197, %v194
    // Predicated region
    $region22: #{tpu_custom_call.1} parent=1 // pred_check
      _
    $region23: #{tpu_custom_call.1} parent=1 // pred_check_branch
      %200 = sbr.rel (0) target = $region25
    $region24: #{tpu_custom_call.1} parent=1 // pred_region
      %s202 = ssub.s32 128, 128
      %203 = vsyncadd [#allocation3], %s202
      %s205 = sshll.u32 [#allocation2], 4
      %s206 = int_to_ptr.vmem [resolvable:$true] %s205
      %208 = dma.vmem_to_hbm [thread:$0]  %s206, 128, %s5, [#allocation3]
    $region25: #{tpu_custom_call.1} parent=1 // pred_fallthru
      _
    // Predicated region
    $region26: #{tpu_custom_call.1} parent=1 // pred_check
      _
    $region27: #{tpu_custom_call.1} parent=1 // pred_check_branch
      %210 = sbr.rel (0) target = $region29
    $region28: #{tpu_custom_call.1} parent=1 // pred_region
      %211 = dma.done [#allocation3], 128
    $region29: #{tpu_custom_call.1} parent=1 // pred_fallthru
      _
    %212 = vsyncpa [#allocation3], 1

</llo_original>
